<compile_context>
chip_gen: v7x
topology: tpu7x:2x2x1
jax: 0.10.0
libtpu: 0.0.40
codegen_flags: <defaults>
</compile_context>

<pallas_src>
import jax
import jax.numpy as jnp
from jax.experimental import pallas as pl
from jax.experimental.pallas import tpu as pltpu

# ---- module hyper-parameters (consistent with the PyTorch module) ----
Z_DIM = 32
W_DIM = 32
NUM_LAYERS = 2
LR_MULTIPLIER = 0.01
LRELU_SLOPE = 0.2
LRELU_GAIN = 2.0 ** 0.5  # default bias_act gain for 'lrelu'

LANES = 128
assert Z_DIM == W_DIM and LANES % Z_DIM == 0, "packing assumes z_dim == w_dim == 32"
PACK = LANES // W_DIM          # 4 batch rows packed per 128-lane row

MIN_TILE_WIDE = 256            # >=256 wide rows amortizes the ~0.35us per-step overhead
MAX_TILE_WIDE = 2048           # 1 MiB f32 per buffer
TARGET_STEPS = 8               # >=4 grid steps per TensorCore on v7x (2 TCs)


def _lrelu_raw(x):
    # leaky_relu WITHOUT the sqrt(2) gain (gain applied separately / folded into weights)
    return jnp.where(x >= 0, x, LRELU_SLOPE * x)


def sg2_stylenet_kernel(z_ref, mseg_ref, w0_ref, b0_ref, w1_ref, b1_ref, out_ref):
    """One batch tile in packed [tile, 128] layout: RMS norm + 2x (matmul + bias + lrelu)."""
    x = z_ref[...]                                               # f32 [tile, 128]

    # RMS norm per original row: mseg (bf16, block-diagonal ones/32) broadcasts each
    # 32-lane segment's mean of squares back across its own segment via the MXU.
    sq = x * x                                                   # f32 (VPU)
    mean = jnp.dot(sq.astype(jnp.bfloat16), mseg_ref[...],
                   preferred_element_type=jnp.float32)
    x = x * jax.lax.rsqrt(mean + 1e-8)                           # f32 (EUP rsqrt)

    # fc0 / fc1: block-diagonal 128x128 bf16 weights = 4 independent 32x32 matmuls at once.
    # lr-multiplier / weight gains and fc0's sqrt(2) lrelu gain are pre-folded in the wrapper.
    y0 = jnp.dot(x.astype(jnp.bfloat16), w0_ref[...],
                 preferred_element_type=jnp.float32)
    a0 = _lrelu_raw(y0 + b0_ref[...])                            # sqrt(2) folded into w1_bd

    y1 = jnp.dot(a0.astype(jnp.bfloat16), w1_ref[...],
                 preferred_element_type=jnp.float32)
    out_ref[...] = _lrelu_raw(y1 + b1_ref[...]) * LRELU_GAIN     # final layer keeps its gain


def _pick_tile(n_wide):
    """Return (padded n_wide, tile) so tile covers n_wide exactly and pipelining is possible."""
    if n_wide <= MIN_TILE_WIDE:
        return n_wide, n_wide                                    # single full-array block
    steps = max(TARGET_STEPS, -(-n_wide // MAX_TILE_WIDE))
    tile = -(-n_wide // steps)                                   # cdiv
    tile = max(MIN_TILE_WIDE, ((tile + 7) // 8) * 8)             # multiple of 8 wide rows
    n_pad = -(-n_wide // tile) * tile                            # exact grid coverage
    return n_pad, tile


def init_params(key):
    """Matches FullyConnectedLayer.__init__: weight = randn([out, in]) / lr_multiplier.
    (Module init has bias = 0; small random biases used here to exercise the bias path.)"""
    k0, k1, k2, k3 = jax.random.split(key, 4)
    w0 = jax.random.normal(k0, (W_DIM, Z_DIM), jnp.float32) / LR_MULTIPLIER
    b0 = jax.random.normal(k2, (W_DIM,), jnp.float32)
    w1 = jax.random.normal(k1, (W_DIM, W_DIM), jnp.float32) / LR_MULTIPLIER
    b1 = jax.random.normal(k3, (W_DIM,), jnp.float32)
    return w0, b0, w1, b1


@jax.jit
def sg2_stylenet_forward(z, w0, b0, w1, b1):
    B = z.shape[0]

    # --- one-time parameter prep (outside the kernel / hot loop) -------------------------
    gain0 = LR_MULTIPLIER / (Z_DIM ** 0.5)       # weight_gain of fc0
    gain1 = LR_MULTIPLIER / (W_DIM ** 0.5)       # weight_gain of fc1
    eye_p = jnp.eye(PACK, dtype=jnp.float32)
    w0_bd = jnp.kron(eye_p, w0.T * gain0).astype(jnp.bfloat16)                   # [128,128]
    # fc0's sqrt(2) lrelu gain folded into fc1's weights (linearity), NOT into its bias.
    w1_bd = jnp.kron(eye_p, w1.T * (gain1 * LRELU_GAIN)).astype(jnp.bfloat16)    # [128,128]
    b0_w = jnp.tile(b0 * LR_MULTIPLIER, PACK).reshape(1, LANES)                  # f32 [1,128]
    b1_w = jnp.tile(b1 * LR_MULTIPLIER, PACK).reshape(1, LANES)
    mseg = jnp.kron(eye_p, jnp.full((Z_DIM, Z_DIM), 1.0 / Z_DIM,
                                    jnp.float32)).astype(jnp.bfloat16)           # [128,128]

    # --- pack 4 batch rows per 128-lane row (lane-dense DMA + stores) ---------------------
    n_wide = -(-B // PACK)                        # wide rows needed to hold B batch rows
    n_wide_pad, tile = _pick_tile(n_wide)
    B_total = n_wide_pad * PACK

    z_f32 = z.astype(jnp.float32)
    if B_total != B:
        z_f32 = jnp.pad(z_f32, ((0, B_total - B), (0, 0)))       # zero rows -> finite, sliced off
    z_wide = z_f32.reshape(n_wide_pad, LANES)                     # byte-identical reshape

    grid = (n_wide_pad // tile,)

    out_wide = pl.pallas_call(
        sg2_stylenet_kernel,
        out_shape=jax.ShapeDtypeStruct((n_wide_pad, LANES), jnp.float32),
        grid_spec=pltpu.PrefetchScalarGridSpec(
            num_scalar_prefetch=0,
            grid=grid,
            in_specs=[
                pl.BlockSpec((tile, LANES), lambda i: (i, 0)),     # z tile (pipelined)
                pl.BlockSpec((LANES, LANES), lambda i: (0, 0)),    # mseg   (VMEM-resident, bf16)
                pl.BlockSpec((LANES, LANES), lambda i: (0, 0)),    # w0_bd  (VMEM-resident, bf16)
                pl.BlockSpec((1, LANES), lambda i: (0, 0)),        # b0     (VMEM-resident, f32)
                pl.BlockSpec((LANES, LANES), lambda i: (0, 0)),    # w1_bd  (VMEM-resident, bf16)
                pl.BlockSpec((1, LANES), lambda i: (0, 0)),        # b1     (VMEM-resident, f32)
            ],
            out_specs=pl.BlockSpec((tile, LANES), lambda i: (i, 0)),
        ),
        compiler_params=pltpu.CompilerParams(
            dimension_semantics=("parallel",),                     # v7x: shard batch across 2 TCs
        ),
    )(z_wide, mseg, w0_bd, b0_w, w1_bd, b1_w)

    return out_wide.reshape(B_total, W_DIM)[:B]


def reference_forward(z, w0, b0, w1, b1):
    """Pure-JAX f32 reference replicating the PyTorch forward exactly."""
    x = z.astype(jnp.float32)
    x = x * jax.lax.rsqrt(jnp.mean(jnp.square(x), axis=1, keepdims=True) + 1e-8)
    for w, b in ((w0, b0), (w1, b1)):
        in_f = w.shape[1]
        y = x @ (w * (LR_MULTIPLIER / (in_f ** 0.5))).T + b * LR_MULTIPLIER
        x = jnp.where(y >= 0, y, LRELU_SLOPE * y) * LRELU_GAIN
    return x


if __name__ == "__main__":
    key = jax.random.PRNGKey(0)
    kz, kp = jax.random.split(key)
    batch = 8
    z = jax.random.normal(kz, (batch, Z_DIM), jnp.float32)
    w0, b0, w1, b1 = init_params(kp)

    out = jax.block_until_ready(sg2_stylenet_forward(z, w0, b0, w1, b1))

    ref = reference_forward(z, w0, b0, w1, b1)
    assert out.shape == (batch, W_DIM)
    assert bool(jnp.all(jnp.isfinite(out))), "non-finite output"
    # bf16 matmul operands (f32 accumulation) vs. pure-f32 reference: allow ~1-2% error.
    assert jnp.allclose(out, ref, atol=5e-2, rtol=5e-2), "mismatch vs reference"
    print("KERNEL_OK")
</pallas_src>

<mosaic_0001>
module attributes {stable_mosaic.version = 11 : i64} {
  func.func @sg2_stylenet_kernel(%arg0: i32, %arg1: memref<2x128xf32, #tpu.memory_space<vmem>>, %arg2: memref<128x128xbf16, #tpu.memory_space<vmem>>, %arg3: memref<128x128xbf16, #tpu.memory_space<vmem>>, %arg4: memref<1x128xf32, #tpu.memory_space<vmem>>, %arg5: memref<128x128xbf16, #tpu.memory_space<vmem>>, %arg6: memref<1x128xf32, #tpu.memory_space<vmem>>, %arg7: memref<2x128xf32, #tpu.memory_space<vmem>>) attributes {dimension_semantics = [#tpu.dimension_semantics<parallel>], iteration_bounds = array<i64: 1>, scalar_prefetch = 0 : i64, scratch_operands = 0 : i64, tpu.core_type = #tpu.core_type<tc>, window_params = [{transform_indices = @transform_0, window_bounds = array<i64: 2, 128>}, {pipeline_mode = #tpu.pipeline_mode<synchronous>, transform_indices = @transform_1, window_bounds = array<i64: 128, 128>}, {pipeline_mode = #tpu.pipeline_mode<synchronous>, transform_indices = @transform_2, window_bounds = array<i64: 128, 128>}, {pipeline_mode = #tpu.pipeline_mode<synchronous>, transform_indices = @transform_3, window_bounds = array<i64: 1, 128>}, {pipeline_mode = #tpu.pipeline_mode<synchronous>, transform_indices = @transform_4, window_bounds = array<i64: 128, 128>}, {pipeline_mode = #tpu.pipeline_mode<synchronous>, transform_indices = @transform_5, window_bounds = array<i64: 1, 128>}, {transform_indices = @transform_6, window_bounds = array<i64: 2, 128>}]} {
    %c0 = arith.constant 0 : index
    %c0_0 = arith.constant 0 : index
    %0 = vector.load %arg1[%c0, %c0_0] : memref<2x128xf32, #tpu.memory_space<vmem>>, vector<2x128xf32>
    %1 = arith.mulf %0, %0 : vector<2x128xf32>
    %2 = arith.truncf %1 : vector<2x128xf32> to vector<2x128xbf16>
    %c0_1 = arith.constant 0 : index
    %c0_2 = arith.constant 0 : index
    %3 = vector.load %arg2[%c0_1, %c0_2] : memref<128x128xbf16, #tpu.memory_space<vmem>>, vector<128x128xbf16>
    %cst = arith.constant dense<0.000000e+00> : vector<2x128xf32>
    %4 = tpu.matmul %2, %3, %cst {dimension_numbers = #tpu.dot_dimension_numbers<[1], [0], [0], [1], [0, 0, 1, 1], [], []>} : vector<2x128xbf16>, vector<128x128xbf16>, vector<2x128xf32> -> vector<2x128xf32>
    %cst_3 = arith.constant 9.99999993E-9 : f32
    %5 = vector.broadcast %cst_3 : f32 to vector<2x128xf32>
    %6 = arith.addf %4, %5 : vector<2x128xf32>
    %7 = math.rsqrt %6 : vector<2x128xf32>
    %8 = arith.mulf %0, %7 : vector<2x128xf32>
    %9 = arith.truncf %8 : vector<2x128xf32> to vector<2x128xbf16>
    %c0_4 = arith.constant 0 : index
    %c0_5 = arith.constant 0 : index
    %10 = vector.load %arg3[%c0_4, %c0_5] : memref<128x128xbf16, #tpu.memory_space<vmem>>, vector<128x128xbf16>
    %cst_6 = arith.constant dense<0.000000e+00> : vector<2x128xf32>
    %11 = tpu.matmul %9, %10, %cst_6 {dimension_numbers = #tpu.dot_dimension_numbers<[1], [0], [0], [1], [0, 0, 1, 1], [], []>} : vector<2x128xbf16>, vector<128x128xbf16>, vector<2x128xf32> -> vector<2x128xf32>
    %c0_7 = arith.constant 0 : index
    %c0_8 = arith.constant 0 : index
    %12 = vector.load %arg4[%c0_7, %c0_8] : memref<1x128xf32, #tpu.memory_space<vmem>>, vector<1x128xf32>
    %13 = vector.broadcast %12 : vector<1x128xf32> to vector<2x128xf32>
    %14 = arith.addf %11, %13 : vector<2x128xf32>
    %cst_9 = arith.constant 0.000000e+00 : f32
    %15 = vector.broadcast %cst_9 : f32 to vector<2x128xf32>
    %16 = arith.cmpf oge, %14, %15 : vector<2x128xf32>
    %cst_10 = arith.constant 2.000000e-01 : f32
    %17 = vector.broadcast %cst_10 : f32 to vector<2x128xf32>
    %18 = arith.mulf %17, %14 : vector<2x128xf32>
    %19 = arith.select %16, %14, %18 : vector<2x128xi1>, vector<2x128xf32>
    %20 = arith.truncf %19 : vector<2x128xf32> to vector<2x128xbf16>
    %c0_11 = arith.constant 0 : index
    %c0_12 = arith.constant 0 : index
    %21 = vector.load %arg5[%c0_11, %c0_12] : memref<128x128xbf16, #tpu.memory_space<vmem>>, vector<128x128xbf16>
    %cst_13 = arith.constant dense<0.000000e+00> : vector<2x128xf32>
    %22 = tpu.matmul %20, %21, %cst_13 {dimension_numbers = #tpu.dot_dimension_numbers<[1], [0], [0], [1], [0, 0, 1, 1], [], []>} : vector<2x128xbf16>, vector<128x128xbf16>, vector<2x128xf32> -> vector<2x128xf32>
    %c0_14 = arith.constant 0 : index
    %c0_15 = arith.constant 0 : index
    %23 = vector.load %arg6[%c0_14, %c0_15] : memref<1x128xf32, #tpu.memory_space<vmem>>, vector<1x128xf32>
    %24 = vector.broadcast %23 : vector<1x128xf32> to vector<2x128xf32>
    %25 = arith.addf %22, %24 : vector<2x128xf32>
    %cst_16 = arith.constant 0.000000e+00 : f32
    %26 = vector.broadcast %cst_16 : f32 to vector<2x128xf32>
    %27 = arith.cmpf oge, %25, %26 : vector<2x128xf32>
    %cst_17 = arith.constant 2.000000e-01 : f32
    %28 = vector.broadcast %cst_17 : f32 to vector<2x128xf32>
    %29 = arith.mulf %28, %25 : vector<2x128xf32>
    %30 = arith.select %27, %25, %29 : vector<2x128xi1>, vector<2x128xf32>
    %cst_18 = arith.constant 1.41421354 : f32
    %31 = vector.broadcast %cst_18 : f32 to vector<2x128xf32>
    %32 = arith.mulf %30, %31 : vector<2x128xf32>
    %c0_19 = arith.constant 0 : index
    %c0_20 = arith.constant 0 : index
    %33 = vector.load %arg7[%c0_19, %c0_20] : memref<2x128xf32, #tpu.memory_space<vmem>>, vector<2x128xf32>
    tpu.vector_store %arg7[%c0_19, %c0_20], %32 {strides = array<i32>} : memref<2x128xf32, #tpu.memory_space<vmem>>, vector<2x128xf32>,
    return
  }
  func.func @transform_0(%arg0: i32) -> (i32, i32) {
    %c0_i32 = arith.constant 0 : i32
    %c0_i32_0 = arith.constant 0 : i32
    return %arg0, %c0_i32 : i32, i32
  }
  func.func @transform_1(%arg0: i32) -> (i32, i32) {
    %c0_i32 = arith.constant 0 : i32
    %c0_i32_0 = arith.constant 0 : i32
    %c0_i32_1 = arith.constant 0 : i32
    return %c0_i32, %c0_i32_0 : i32, i32
  }
  func.func @transform_2(%arg0: i32) -> (i32, i32) {
    %c0_i32 = arith.constant 0 : i32
    %c0_i32_0 = arith.constant 0 : i32
    %c0_i32_1 = arith.constant 0 : i32
    return %c0_i32, %c0_i32_0 : i32, i32
  }
  func.func @transform_3(%arg0: i32) -> (i32, i32) {
    %c0_i32 = arith.constant 0 : i32
    %c0_i32_0 = arith.constant 0 : i32
    %c0_i32_1 = arith.constant 0 : i32
    return %c0_i32, %c0_i32_0 : i32, i32
  }
  func.func @transform_4(%arg0: i32) -> (i32, i32) {
    %c0_i32 = arith.constant 0 : i32
    %c0_i32_0 = arith.constant 0 : i32
    %c0_i32_1 = arith.constant 0 : i32
    return %c0_i32, %c0_i32_0 : i32, i32
  }
  func.func @transform_5(%arg0: i32) -> (i32, i32) {
    %c0_i32 = arith.constant 0 : i32
    %c0_i32_0 = arith.constant 0 : i32
    %c0_i32_1 = arith.constant 0 : i32
    return %c0_i32, %c0_i32_0 : i32, i32
  }
  func.func @transform_6(%arg0: i32) -> (i32, i32) {
    %c0_i32 = arith.constant 0 : i32
    %c0_i32_0 = arith.constant 0 : i32
    return %arg0, %c0_i32 : i32, i32
  }
}

</mosaic_0001>

<llo_original>
// kernel: tile.13
$region0: #{tile.13}
  #allocation0 [shape = 's32[1]{0}', space=sflag, size = 0x4, scoped, tag = 'scoped memory for tile.13']
  %s0 = inlined_call_operand.vmem [shape: f32[32], index: 0, kind: input, shape index: {}]
  %s1 = inlined_call_operand.vmem [shape: f32[4,32], index: 1, kind: output, shape index: {}]
  // Predicated region
  $region2: #{tile.13} parent=0 // pred_check
    _
  $region3: #{tile.13} parent=0 // pred_check_branch
    %3 = sbr.rel (0) target = $region5
  $region4: #{tile.13} parent=0 // pred_region
    _
  $region5: #{tile.13} parent=0 // pred_fallthru
    _
  %v4 = vld [vmem:[%s0] ss:$0 sm:$0xff]
  %5 = vst [vmem:[%s1] sm:$0xf] %v4

// kernel: tile.14
$region0: #{tile.14}
  %s0 = inlined_call_operand.vmem [shape: f32[4,32], index: 0, kind: input, shape index: {}]
  %s1 = inlined_call_operand.vmem [shape: f32[1,128], index: 1, kind: output, shape index: {}]
  $region1: #{tile.14} parent=0
    #allocation0 [shape = 'u8[4096]{0}', space=vmem, size = 0x1000, scoped, tag = 'scoped mem for output reshape']
    #allocation1 [shape = 'u8[4096]{0}', space=vmem, size = 0x1000, scoped, tag = 'scoped mem for input reshape']
    %s3 = sshllo.u32 0, 4
    %v4 = vld [vmem:[%s0] sm:%s3]
    %5 = vst [vmem:[#allocation1] sm:%s3] %v4
    %v6 = vld [vmem:[#allocation1] sm:$0x1]
    %vm7 = vcmask 261120
    %8 = vst.msk [vmem:[#allocation0] sm:$0x1] %vm7, %v6
    %s9 = scalar_lea.vmem [#allocation1], 3
    %v10 = vld [vmem:[%s9] sm:$0x1]
    %11 = vrot.lane.b32.xlu0 %v10, 96
    %v12 = vpop.permute.xlu0 %11
    %vm13 = vcmask 1048320
    %14 = vst.msk [vmem:[#allocation0] sm:$0x1] %vm13, %v12
    %s15 = scalar_lea.vmem [#allocation1], 2
    %v16 = vld [vmem:[%s15] sm:$0x1]
    %17 = vrot.lane.b32.xlu0 %v16, 64
    %v18 = vpop.permute.xlu0 %17
    %vm19 = vcmask 785920
    %20 = vst.msk [vmem:[#allocation0] sm:$0x1] %vm19, %v18
    %s21 = scalar_lea.vmem [#allocation1], 1
    %v22 = vld [vmem:[%s21] sm:$0x1]
    %23 = vrot.lane.b32.xlu0 %v22, 32
    %v24 = vpop.permute.xlu0 %23
    %vm25 = vcmask 523520
    %26 = vst.msk [vmem:[#allocation0] sm:$0x1] %vm25, %v24
    %s28 = sshllo.u32 0, 1
    %v30 = vld [vmem:[#allocation0] sm:%s28]
    %s31 = sshllo.u32 0, 1
    %32 = vst [vmem:[%s1] sm:%s31] %v30

// kernel: sg2_stylenet_forward.1
$region0: #{sg2_stylenet_forward.1}
  #allocation0 [shape = 'u32[]', space=smem, size = 0x4, offset = 0x4, fixed_abs, tag = 'smem constant byte address 0x4 - core index']
  #allocation1 [shape = 'u32[144,128]{1,0:T(1,128)}', space=vmem, size = 0x12000, scoped, tag = 'internal scratch']
  %s0 = inlined_call_operand.vmem [shape: f32[2,128], index: 0, kind: input, shape index: {}]
  %s1 = inlined_call_operand.vmem [shape: bf16[128,128], index: 1, kind: input, shape index: {}]
  %s2 = inlined_call_operand.vmem [shape: bf16[128,128], index: 2, kind: input, shape index: {}]
  %s3 = inlined_call_operand.vmem [shape: f32[1,128], index: 3, kind: input, shape index: {}]
  %s4 = inlined_call_operand.vmem [shape: bf16[128,128], index: 4, kind: input, shape index: {}]
  %s5 = inlined_call_operand.vmem [shape: f32[1,128], index: 5, kind: input, shape index: {}]
  %s6 = inlined_call_operand.vmem [shape: f32[2,128], index: 6, kind: output, shape index: {}]
  %s7 = sld [smem:[#allocation0]]
  $region34: #{sg2_stylenet_forward.1} parent=0
    _
  %s9 = ssub.s32 1, %s7
  %s10 = scalar_select 0, %s9, %s7
  // Predicated region
  $region2: #{sg2_stylenet_forward.1} parent=0 // pred_check
    _
  $region3: #{sg2_stylenet_forward.1} parent=0 // pred_check_branch
    %12 = sbr.rel (0) target = $region5
  $region4: #{sg2_stylenet_forward.1} parent=0 // pred_region
    _
  $region5: #{sg2_stylenet_forward.1} parent=0 // pred_fallthru
    _
  // Predicated region
  $region6: #{sg2_stylenet_forward.1} parent=0 // pred_check
    _
  $region7: #{sg2_stylenet_forward.1} parent=0 // pred_check_branch
    %14 = sbr.rel (0) target = $region9
  $region8: #{sg2_stylenet_forward.1} parent=0 // pred_region
    _
  $region9: #{sg2_stylenet_forward.1} parent=0 // pred_fallthru
    _
  // Predicated region
  $region10: #{sg2_stylenet_forward.1} parent=0 // pred_check
    _
  $region11: #{sg2_stylenet_forward.1} parent=0 // pred_check_branch
    %16 = sbr.rel (0) target = $region13
  $region12: #{sg2_stylenet_forward.1} parent=0 // pred_region
    _
  $region13: #{sg2_stylenet_forward.1} parent=0 // pred_fallthru
    _
  // Predicated region
  $region14: #{sg2_stylenet_forward.1} parent=0 // pred_check
    _
  $region15: #{sg2_stylenet_forward.1} parent=0 // pred_check_branch
    %18 = sbr.rel (0) target = $region17
  $region16: #{sg2_stylenet_forward.1} parent=0 // pred_region
    _
  $region17: #{sg2_stylenet_forward.1} parent=0 // pred_fallthru
    _
  // Predicated region
  $region18: #{sg2_stylenet_forward.1} parent=0 // pred_check
    _
  $region19: #{sg2_stylenet_forward.1} parent=0 // pred_check_branch
    %20 = sbr.rel (0) target = $region21
  $region20: #{sg2_stylenet_forward.1} parent=0 // pred_region
    _
  $region21: #{sg2_stylenet_forward.1} parent=0 // pred_fallthru
    _
  // Predicated region
  $region22: #{sg2_stylenet_forward.1} parent=0 // pred_check
    _
  $region23: #{sg2_stylenet_forward.1} parent=0 // pred_check_branch
    %22 = sbr.rel (0) target = $region25
  $region24: #{sg2_stylenet_forward.1} parent=0 // pred_region
    _
  $region25: #{sg2_stylenet_forward.1} parent=0 // pred_fallthru
    _
  %v24 = vld [vmem:[%s0] sm:$0x3]
  %v25 = vmul.f32 %v24, %v24
  %v26 = vpack.c.bf16 %v25, %v25
  %v27 = vld [vmem:[%s1] sm:$0xf]
  %v28 = vld [vmem:[%s1 + $0x4] sm:$0xf]
  %v29 = vld [vmem:[%s1 + $0x8] sm:$0xf]
  %v30 = vld [vmem:[%s1 + $0xc] sm:$0xf]
  %v31 = vld [vmem:[%s1 + $0x10] sm:$0xf]
  %v32 = vld [vmem:[%s1 + $0x14] sm:$0xf]
  %v33 = vld [vmem:[%s1 + $0x18] sm:$0xf]
  %v34 = vld [vmem:[%s1 + $0x1c] sm:$0xf]
  %v35 = vld [vmem:[%s1 + $0x20] sm:$0xf]
  %v36 = vld [vmem:[%s1 + $0x24] sm:$0xf]
  %v37 = vld [vmem:[%s1 + $0x28] sm:$0xf]
  %v38 = vld [vmem:[%s1 + $0x2c] sm:$0xf]
  %v39 = vld [vmem:[%s1 + $0x30] sm:$0xf]
  %v40 = vld [vmem:[%s1 + $0x34] sm:$0xf]
  %v41 = vld [vmem:[%s1 + $0x38] sm:$0xf]
  %v42 = vld [vmem:[%s1 + $0x3c] sm:$0xf]
  %v59 = vunpack.c.l.b16 %v27
  %v60 = vunpack.c.l.b16 %v28
  %v61 = vunpack.c.l.b16 %v29
  %v62 = vunpack.c.l.b16 %v30
  %v63 = vunpack.c.l.b16 %v31
  %v64 = vunpack.c.l.b16 %v32
  %v65 = vunpack.c.l.b16 %v33
  %v66 = vunpack.c.l.b16 %v34
  %v67 = vunpack.c.l.b16 %v35
  %v68 = vunpack.c.l.b16 %v36
  %v69 = vunpack.c.l.b16 %v37
  %v70 = vunpack.c.l.b16 %v38
  %v71 = vunpack.c.l.b16 %v39
  %v72 = vunpack.c.l.b16 %v40
  %v73 = vunpack.c.l.b16 %v41
  %v74 = vunpack.c.l.b16 %v42
  %v75 = vpack.c.b16 %v60, %v59
  %v76 = vpack.c.b16 %v62, %v61
  %v77 = vpack.c.b16 %v64, %v63
  %v78 = vpack.c.b16 %v66, %v65
  %v79 = vpack.c.b16 %v68, %v67
  %v80 = vpack.c.b16 %v70, %v69
  %v81 = vpack.c.b16 %v72, %v71
  %v82 = vpack.c.b16 %v74, %v73
  %91 = vmatprep.subr.bf16.mxu0 0
  %92 = vmatpush1.bf16.msra.mxu0 %v75
  %93 = vmatprep.subr.bf16.mxu0 0
  %94 = vmatpush1.bf16.msra.mxu0 %v76
  %95 = vmatprep.subr.bf16.mxu0 0
  %96 = vmatpush1.bf16.msra.mxu0 %v77
  %97 = vmatprep.subr.bf16.mxu0 0
  %98 = vmatpush1.bf16.msra.mxu0 %v78
  %99 = vmatprep.subr.bf16.mxu0 0
  %100 = vmatpush1.bf16.msra.mxu0 %v79
  %101 = vmatprep.subr.bf16.mxu0 0
  %102 = vmatpush1.bf16.msra.mxu0 %v80
  %103 = vmatprep.subr.bf16.mxu0 0
  %104 = vmatpush1.bf16.msra.mxu0 %v81
  %105 = vmatprep.subr.bf16.mxu0 0
  %106 = vmatpush1.bf16.msra.mxu0 %v82
  %107 = vmatprep.subr.bf16.mxu0 0
  %108 = vmatpush1.bf16.msra.mxu0 0
  %109 = vmatprep.subr.bf16.mxu0 0
  %110 = vmatpush1.bf16.msra.mxu0 0
  %111 = vmatprep.subr.bf16.mxu0 0
  %112 = vmatpush1.bf16.msra.mxu0 0
  %113 = vmatprep.subr.bf16.mxu0 0
  %114 = vmatpush1.bf16.msra.mxu0 0
  %115 = vmatprep.subr.bf16.mxu0 0
  %116 = vmatpush1.bf16.msra.mxu0 0
  %117 = vmatprep.subr.bf16.mxu0 0
  %118 = vmatpush1.bf16.msra.mxu0 0
  %119 = vmatprep.subr.bf16.mxu0 0
  %120 = vmatpush1.bf16.msra.mxu0 0
  %121 = vmatprep.subr.bf16.mxu0 0
  %122 = vmatpush1.bf16.msra.mxu0 0
  %123 = vmatprep.mubr.bf16.mxu0 0
  %124 = vmatmul.mubr.bf16.gmra.mrb[0].mxu0 %v26
  %v125 = vpop.f32.mrb[0].mxu0
  %v126 = vadd.f32 1e-08, %v125
  %v127 = vpop.f32.mrb[0].mxu0
  %v128 = vpop.f32.mrb[0].mxu0
  %v129 = vpop.f32.mrb[0].mxu0
  %130 = vdwg.mxu0
  %v131 = vrsqrt.pop %v126
  %v132 = vmul.f32 %v24, %v131
  %v133 = vpack.c.bf16 %v132, %v132
  %v134 = vld [vmem:[%s2] sm:$0xf]
  %v135 = vld [vmem:[%s2 + $0x4] sm:$0xf]
  %v136 = vld [vmem:[%s2 + $0x8] sm:$0xf]
  %v137 = vld [vmem:[%s2 + $0xc] sm:$0xf]
  %v138 = vld [vmem:[%s2 + $0x10] sm:$0xf]
  %v139 = vld [vmem:[%s2 + $0x14] sm:$0xf]
  %v140 = vld [vmem:[%s2 + $0x18] sm:$0xf]
  %v141 = vld [vmem:[%s2 + $0x1c] sm:$0xf]
  %v142 = vld [vmem:[%s2 + $0x20] sm:$0xf]
  %v143 = vld [vmem:[%s2 + $0x24] sm:$0xf]
  %v144 = vld [vmem:[%s2 + $0x28] sm:$0xf]
  %v145 = vld [vmem:[%s2 + $0x2c] sm:$0xf]
  %v146 = vld [vmem:[%s2 + $0x30] sm:$0xf]
  %v147 = vld [vmem:[%s2 + $0x34] sm:$0xf]
  %v148 = vld [vmem:[%s2 + $0x38] sm:$0xf]
  %v149 = vld [vmem:[%s2 + $0x3c] sm:$0xf]
  %v150 = vld [vmem:[%s3] sm:$0x1]
  %v152 = vlaneseq
  %v153 = vshrl.u32 %v152, 7
  %v154 = vsub.s32 0, %v153
  %v155 = vrot.slane %v150, %v154
  %v173 = vunpack.c.l.b16 %v134
  %v174 = vunpack.c.l.b16 %v135
  %v175 = vunpack.c.l.b16 %v136
  %v176 = vunpack.c.l.b16 %v137
  %v177 = vunpack.c.l.b16 %v138
  %v178 = vunpack.c.l.b16 %v139
  %v179 = vunpack.c.l.b16 %v140
  %v180 = vunpack.c.l.b16 %v141
  %v181 = vunpack.c.l.b16 %v142
  %v182 = vunpack.c.l.b16 %v143
  %v183 = vunpack.c.l.b16 %v144
  %v184 = vunpack.c.l.b16 %v145
  %v185 = vunpack.c.l.b16 %v146
  %v186 = vunpack.c.l.b16 %v147
  %v187 = vunpack.c.l.b16 %v148
  %v188 = vunpack.c.l.b16 %v149
  %v189 = vpack.c.b16 %v174, %v173
  %v190 = vpack.c.b16 %v176, %v175
  %v191 = vpack.c.b16 %v178, %v177
  %v192 = vpack.c.b16 %v180, %v179
  %v193 = vpack.c.b16 %v182, %v181
  %v194 = vpack.c.b16 %v184, %v183
  %v195 = vpack.c.b16 %v186, %v185
  %v196 = vpack.c.b16 %v188, %v187
  %205 = vmatprep.subr.bf16.mxu0 0
  %206 = vmatpush1.bf16.msra.mxu0 %v189
  %207 = vmatprep.subr.bf16.mxu0 0
  %208 = vmatpush1.bf16.msra.mxu0 %v190
  %209 = vmatprep.subr.bf16.mxu0 0
  %210 = vmatpush1.bf16.msra.mxu0 %v191
  %211 = vmatprep.subr.bf16.mxu0 0
  %212 = vmatpush1.bf16.msra.mxu0 %v192
  %213 = vmatprep.subr.bf16.mxu0 0
  %214 = vmatpush1.bf16.msra.mxu0 %v193
  %215 = vmatprep.subr.bf16.mxu0 0
  %216 = vmatpush1.bf16.msra.mxu0 %v194
  %217 = vmatprep.subr.bf16.mxu0 0
  %218 = vmatpush1.bf16.msra.mxu0 %v195
  %219 = vmatprep.subr.bf16.mxu0 0
  %220 = vmatpush1.bf16.msra.mxu0 %v196
  %221 = vmatprep.subr.bf16.mxu0 0
  %222 = vmatpush1.bf16.msra.mxu0 0
  %223 = vmatprep.subr.bf16.mxu0 0
  %224 = vmatpush1.bf16.msra.mxu0 0
  %225 = vmatprep.subr.bf16.mxu0 0
  %226 = vmatpush1.bf16.msra.mxu0 0
  %227 = vmatprep.subr.bf16.mxu0 0
  %228 = vmatpush1.bf16.msra.mxu0 0
  %229 = vmatprep.subr.bf16.mxu0 0
  %230 = vmatpush1.bf16.msra.mxu0 0
  %231 = vmatprep.subr.bf16.mxu0 0
  %232 = vmatpush1.bf16.msra.mxu0 0
  %233 = vmatprep.subr.bf16.mxu0 0
  %234 = vmatpush1.bf16.msra.mxu0 0
  %235 = vmatprep.subr.bf16.mxu0 0
  %236 = vmatpush1.bf16.msra.mxu0 0
  %237 = vmatprep.mubr.bf16.mxu0 0
  %238 = vmatmul.mubr.bf16.gmra.mrb[0].mxu0 %v133
  %v239 = vpop.f32.mrb[0].mxu0
  %v240 = vadd.f32 %v155, %v239
  %v241 = vpop.f32.mrb[0].mxu0
  %v242 = vpop.f32.mrb[0].mxu0
  %v243 = vpop.f32.mrb[0].mxu0
  %244 = vdwg.mxu0
  %vm245 = vcmp.ge.f32.partialorder %v240, 0.0
  %v246 = vmul.f32 %v240, 0.2
  %v247 = vsel %vm245, %v240, %v246
  %v248 = vpack.c.bf16 %v247, %v247
  %v249 = vld [vmem:[%s4] sm:$0xf]
  %v250 = vld [vmem:[%s4 + $0x4] sm:$0xf]
  %v251 = vld [vmem:[%s4 + $0x8] sm:$0xf]
  %v252 = vld [vmem:[%s4 + $0xc] sm:$0xf]
  %v253 = vld [vmem:[%s4 + $0x10] sm:$0xf]
  %v254 = vld [vmem:[%s4 + $0x14] sm:$0xf]
  %v255 = vld [vmem:[%s4 + $0x18] sm:$0xf]
  %v256 = vld [vmem:[%s4 + $0x1c] sm:$0xf]
  %v257 = vld [vmem:[%s4 + $0x20] sm:$0xf]
  %v258 = vld [vmem:[%s4 + $0x24] sm:$0xf]
  %v259 = vld [vmem:[%s4 + $0x28] sm:$0xf]
  %v260 = vld [vmem:[%s4 + $0x2c] sm:$0xf]
  %v261 = vld [vmem:[%s4 + $0x30] sm:$0xf]
  %v262 = vld [vmem:[%s4 + $0x34] sm:$0xf]
  %v263 = vld [vmem:[%s4 + $0x38] sm:$0xf]
  %v264 = vld [vmem:[%s4 + $0x3c] sm:$0xf]
  %v265 = vld [vmem:[%s5] sm:$0x1]
  %v267 = vlaneseq
  %v268 = vshrl.u32 %v267, 7
  %v269 = vsub.s32 0, %v268
  %v270 = vrot.slane %v265, %v269
  %v288 = vunpack.c.l.b16 %v249
  %v289 = vunpack.c.l.b16 %v250
  %v290 = vunpack.c.l.b16 %v251
  %v291 = vunpack.c.l.b16 %v252
  %v292 = vunpack.c.l.b16 %v253
  %v293 = vunpack.c.l.b16 %v254
  %v294 = vunpack.c.l.b16 %v255
  %v295 = vunpack.c.l.b16 %v256
  %v296 = vunpack.c.l.b16 %v257
  %v297 = vunpack.c.l.b16 %v258
  %v298 = vunpack.c.l.b16 %v259
  %v299 = vunpack.c.l.b16 %v260
  %v300 = vunpack.c.l.b16 %v261
  %v301 = vunpack.c.l.b16 %v262
  %v302 = vunpack.c.l.b16 %v263
  %v303 = vunpack.c.l.b16 %v264
  %v304 = vpack.c.b16 %v289, %v288
  %v305 = vpack.c.b16 %v291, %v290
  %v306 = vpack.c.b16 %v293, %v292
  %v307 = vpack.c.b16 %v295, %v294
  %v308 = vpack.c.b16 %v297, %v296
  %v309 = vpack.c.b16 %v299, %v298
  %v310 = vpack.c.b16 %v301, %v300
  %v311 = vpack.c.b16 %v303, %v302
  %320 = vmatprep.subr.bf16.mxu0 0
  %321 = vmatpush1.bf16.msra.mxu0 %v304
  %322 = vmatprep.subr.bf16.mxu0 0
  %323 = vmatpush1.bf16.msra.mxu0 %v305
  %324 = vmatprep.subr.bf16.mxu0 0
  %325 = vmatpush1.bf16.msra.mxu0 %v306
  %326 = vmatprep.subr.bf16.mxu0 0
  %327 = vmatpush1.bf16.msra.mxu0 %v307
  %328 = vmatprep.subr.bf16.mxu0 0
  %329 = vmatpush1.bf16.msra.mxu0 %v308
  %330 = vmatprep.subr.bf16.mxu0 0
  %331 = vmatpush1.bf16.msra.mxu0 %v309
  %332 = vmatprep.subr.bf16.mxu0 0
  %333 = vmatpush1.bf16.msra.mxu0 %v310
  %334 = vmatprep.subr.bf16.mxu0 0
  %335 = vmatpush1.bf16.msra.mxu0 %v311
  %336 = vmatprep.subr.bf16.mxu0 0
  %337 = vmatpush1.bf16.msra.mxu0 0
  %338 = vmatprep.subr.bf16.mxu0 0
  %339 = vmatpush1.bf16.msra.mxu0 0
  %340 = vmatprep.subr.bf16.mxu0 0
  %341 = vmatpush1.bf16.msra.mxu0 0
  %342 = vmatprep.subr.bf16.mxu0 0
  %343 = vmatpush1.bf16.msra.mxu0 0
  %344 = vmatprep.subr.bf16.mxu0 0
  %345 = vmatpush1.bf16.msra.mxu0 0
  %346 = vmatprep.subr.bf16.mxu0 0
  %347 = vmatpush1.bf16.msra.mxu0 0
  %348 = vmatprep.subr.bf16.mxu0 0
  %349 = vmatpush1.bf16.msra.mxu0 0
  %350 = vmatprep.subr.bf16.mxu0 0
  %351 = vmatpush1.bf16.msra.mxu0 0
  %352 = vmatprep.mubr.bf16.mxu0 0
  %353 = vmatmul.mubr.bf16.gmra.mrb[0].mxu0 %v248
  %v354 = vpop.f32.mrb[0].mxu0
  %v355 = vadd.f32 %v270, %v354
  %v356 = vpop.f32.mrb[0].mxu0
  %v357 = vpop.f32.mrb[0].mxu0
  %v358 = vpop.f32.mrb[0].mxu0
  %359 = vdwg.mxu0
  %vm360 = vcmp.ge.f32.partialorder %v355, 0.0
  %v361 = vmul.f32 %v355, 0.2
  %v362 = vsel %vm360, %v355, %v361
  %v363 = vmul.f32 %v362, 1.4142135
  %364 = vst [vmem:[%s6] sm:$0x3] %v363
  // Predicated region
  $region26: #{sg2_stylenet_forward.1} parent=0 // pred_check
    _
  $region27: #{sg2_stylenet_forward.1} parent=0 // pred_check_branch
    %366 = sbr.rel (0) target = $region29
  $region28: #{sg2_stylenet_forward.1} parent=0 // pred_region
    _
  $region29: #{sg2_stylenet_forward.1} parent=0 // pred_fallthru
    _
  // Predicated region
  $region30: #{sg2_stylenet_forward.1} parent=0 // pred_check
    _
  $region31: #{sg2_stylenet_forward.1} parent=0 // pred_check_branch
    %368 = sbr.rel (0) target = $region33
  $region32: #{sg2_stylenet_forward.1} parent=0 // pred_region
    _
  $region33: #{sg2_stylenet_forward.1} parent=0 // pred_fallthru
    _

</llo_original>
